<compile_context>
chip_gen: v7x
topology: tpu7x:2x2x1
jax: 0.10.0
libtpu: 0.0.40
codegen_flags: <defaults>
</compile_context>

<pallas_src>
import jax
import jax.numpy as jnp
from jax.experimental import pallas as pl
from jax.experimental.pallas import tpu as pltpu


# ---------------------------------------------------------------------------
# Host-side helpers
# ---------------------------------------------------------------------------

def _interp_matrix_1d(out_size: int, in_size: int) -> jnp.ndarray:
    """1-D linear interpolation matrix matching PyTorch align_corners=False.

    Every row sums to 1 (edge-clamped linear weights), which is what makes the
    "add conv bias after interpolation" fusion exact.
    """
    scale = in_size / out_size
    i = jnp.arange(out_size, dtype=jnp.float32)
    src = (i + 0.5) * scale - 0.5
    src = jnp.maximum(src, 0.0)                       # PyTorch clamps negatives
    i0 = jnp.clip(jnp.floor(src).astype(jnp.int32), 0, in_size - 1)
    i1 = jnp.minimum(i0 + 1, in_size - 1)
    w1 = src - i0.astype(jnp.float32)
    w0 = 1.0 - w1
    rows = jnp.arange(out_size)
    A = jnp.zeros((out_size, in_size), dtype=jnp.float32)
    A = A.at[rows, i0].add(w0)
    A = A.at[rows, i1].add(w1)
    return A


def _round_up(x: int, m: int) -> int:
    return -(-x // m) * m


def _vmem_caps():
    """Generation-aware (vmem_limit_bytes, block-selection budget)."""
    cap = 64 << 20                                    # conservative (v7x) default
    try:
        info = pltpu.get_tpu_info()
        cap = int(getattr(info, "vmem_capacity_bytes", cap))
    except Exception:
        pass
    # ~92 MiB on 128 MiB chips (v5e/v6e), ~46 MiB on v7x (64 MiB physical).
    vmem_limit_cap = max(32 << 20, int(cap * 0.72))
    block_budget = int(vmem_limit_cap * 0.65)
    return vmem_limit_cap, block_budget


def _pick_lane_tile(total: int, per_lane_bytes: int, budget: int,
                    want_multi_block: bool) -> int:
    """Lane tile: multiple of 128 (or the full extent), <= 2048, VMEM-bounded."""
    if total <= 128:
        return total                                  # full extent (always legal)
    tile = (budget // max(per_lane_bytes, 1)) // 128 * 128
    tile = int(max(128, min(tile, 2048)))
    if tile >= total:
        if want_multi_block and total >= 256:
            half = _round_up(-(-total // 2), 128)     # >= 2 grid steps for v7x
            if half < total:
                return half
        return total
    return tile


# ---------------------------------------------------------------------------
# Wrapper + kernels
# ---------------------------------------------------------------------------

def lateral_connections(slow, fast, conv_w, conv_b, *, mxu_dtype=None):
    """slow: (N,Cs,Ds,Hs,Ws), fast: (N,Cf,Df,Hf,Wf),
    conv_w: (Cs,Cf,1,1,1), conv_b: (Cs,)  ->  (N, 2*Cs, Ds, Hs, Ws).

    mxu_dtype: optional dtype for the MXU operands (e.g. jnp.bfloat16 on v5e);
    default keeps the input dtype. Accumulation is always f32.
    """
    N, Cs, Ds, Hs, Ws = slow.shape
    Nf, Cf, Df, Hf, Wf = fast.shape
    assert N == Nf
    CsDs, CfDf = Cs * Ds, Cf * Df
    HWs, HWf = Hs * Ws, Hf * Wf

    out_dtype = slow.dtype
    cdtype = jnp.dtype(mxu_dtype) if mxu_dtype is not None else jnp.dtype(fast.dtype)
    in_item = cdtype.itemsize
    slow_item = jnp.dtype(slow.dtype).itemsize
    out_item = jnp.dtype(out_dtype).itemsize

    # Fuse 1x1x1 conv and temporal interpolation into one small matrix.
    AD = _interp_matrix_1d(Ds, Df)                                   # (Ds, Df)
    Wm = conv_w.reshape(Cs, Cf).astype(jnp.float32)
    M = jnp.kron(Wm, AD).astype(cdtype)                              # (CsDs, CfDf)
    # Interp rows sum to 1 -> bias after interpolation is exact.
    bias = jnp.repeat(conv_b.astype(jnp.float32), Ds).reshape(CsDs, 1)

    vmem_limit_cap, block_budget = _vmem_caps()

    # Free (contiguous) reshapes only -- no host transposes.
    slow3 = slow.reshape(N, CsDs, HWs)
    fast3 = fast.reshape(N, CfDf, HWf).astype(cdtype)

    if (Hf, Wf) == (Hs, Ws):
        # ---- SlowFast fast path: only the temporal axis is resized ---------
        HW = HWs
        fixed = 2 * CsDs * CfDf * in_item + 8 * CsDs + (2 << 20)   # M + bias + scratch
        per_lane = 2 * (CfDf * in_item + CsDs * slow_item + 2 * CsDs * out_item)
        lane_tile = _pick_lane_tile(
            HW, per_lane, max(block_budget - fixed, 128 * per_lane),
            want_multi_block=(N == 1))
        n_lane = pl.cdiv(HW, lane_tile)
        needed = fixed + per_lane * lane_tile + (2 << 20)
        vmem_limit = int(min(vmem_limit_cap, max(needed, 32 << 20)))

        def fused_kernel(slow_ref, fast_ref, m_ref, b_ref, out_ref):
            # slow_ref: (CsDs, tile)  fast_ref: (CfDf, tile)
            # m_ref: (CsDs, CfDf)     b_ref: (CsDs, 1) f32
            # out_ref: (2*CsDs, tile) -- [slow | conv+interp(fast)] stacked.
            out_ref[pl.ds(0, CsDs), :] = slow_ref[...].astype(out_ref.dtype)
            z = jnp.dot(m_ref[...], fast_ref[...],
                        preferred_element_type=jnp.float32)
            out_ref[pl.ds(CsDs, CsDs), :] = (z + b_ref[...]).astype(out_ref.dtype)

        cost = pl.CostEstimate(
            flops=2 * CsDs * CfDf * N * HW,
            transcendentals=0,
            bytes_accessed=(N * HW * (CfDf * in_item + CsDs * slow_item
                                      + 2 * CsDs * out_item)
                            + CsDs * CfDf * in_item + 4 * CsDs))

        out3 = pl.pallas_call(
            fused_kernel,
            out_shape=jax.ShapeDtypeStruct((N, 2 * CsDs, HW), out_dtype),
            grid_spec=pltpu.PrefetchScalarGridSpec(
                num_scalar_prefetch=0,
                grid=(N, n_lane),
                in_specs=[
                    pl.BlockSpec((None, CsDs, lane_tile), lambda n, l: (n, 0, l)),
                    pl.BlockSpec((None, CfDf, lane_tile), lambda n, l: (n, 0, l)),
                    pl.BlockSpec((CsDs, CfDf), lambda n, l: (0, 0)),
                    pl.BlockSpec((CsDs, 1), lambda n, l: (0, 0)),
                ],
                out_specs=pl.BlockSpec((None, 2 * CsDs, lane_tile),
                                       lambda n, l: (n, 0, l)),
            ),
            compiler_params=pltpu.CompilerParams(
                dimension_semantics=("parallel", "parallel"),
                vmem_limit_bytes=vmem_limit),
            cost_estimate=cost,
        )(slow3, fast3, M, bias)
    else:
        # ---- General fallback: spatial axes are resized too -----------------
        AH = _interp_matrix_1d(Hs, Hf)
        AW = _interp_matrix_1d(Ws, Wf)
        A_hw_t = jnp.kron(AH, AW).T.astype(jnp.float32)              # (HWf, HWs)
        # TODO(synk): separable (AH, AW) matmuls + HWs lane tiling for large
        # spatial maps; dense kron kept for robust lowering of this fallback.

        needed = (2 * (CfDf * HWf * in_item + CsDs * HWs * slow_item
                       + 2 * CsDs * HWs * out_item)
                  + CsDs * CfDf * in_item + HWf * HWs * 4
                  + CsDs * HWf * 4 + 4 * CsDs + (2 << 20))
        vmem_limit = int(min(vmem_limit_cap, max(needed, 32 << 20)))

        def general_kernel(slow_ref, fast_ref, m_ref, b_ref, ahw_ref, out_ref):
            out_ref[pl.ds(0, CsDs), :] = slow_ref[...].astype(out_ref.dtype)
            z = jnp.dot(m_ref[...], fast_ref[...],
                        preferred_element_type=jnp.float32)          # (CsDs, HWf)
            z = jnp.dot(z, ahw_ref[...],
                        preferred_element_type=jnp.float32)          # (CsDs, HWs)
            out_ref[pl.ds(CsDs, CsDs), :] = (z + b_ref[...]).astype(out_ref.dtype)

        cost = pl.CostEstimate(
            flops=2 * N * CsDs * (CfDf * HWf + HWf * HWs),
            transcendentals=0,
            bytes_accessed=(N * (CfDf * HWf * in_item + CsDs * HWs * slow_item
                                 + 2 * CsDs * HWs * out_item)
                            + CsDs * CfDf * in_item + HWf * HWs * 4 + 4 * CsDs))

        out3 = pl.pallas_call(
            general_kernel,
            out_shape=jax.ShapeDtypeStruct((N, 2 * CsDs, HWs), out_dtype),
            grid_spec=pltpu.PrefetchScalarGridSpec(
                num_scalar_prefetch=0,
                grid=(N,),
                in_specs=[
                    pl.BlockSpec((None, CsDs, HWs), lambda n: (n, 0, 0)),
                    pl.BlockSpec((None, CfDf, HWf), lambda n: (n, 0, 0)),
                    pl.BlockSpec((CsDs, CfDf), lambda n: (0, 0)),
                    pl.BlockSpec((CsDs, 1), lambda n: (0, 0)),
                    pl.BlockSpec((HWf, HWs), lambda n: (0, 0)),
                ],
                out_specs=pl.BlockSpec((None, 2 * CsDs, HWs), lambda n: (n, 0, 0)),
            ),
            compiler_params=pltpu.CompilerParams(
                dimension_semantics=("parallel",),
                vmem_limit_bytes=vmem_limit),
            cost_estimate=cost,
        )(slow3, fast3, M, bias, A_hw_t)

    # Contiguous (free) reshape to the module's output layout -- no concat copy.
    return out3.reshape(N, 2 * Cs, Ds, Hs, Ws)


# ---------------------------------------------------------------------------
# Pure-JAX reference
# ---------------------------------------------------------------------------

def _reference(slow, fast, conv_w, conv_b):
    N, Cs, Ds, Hs, Ws = slow.shape
    _, Cf, Df, Hf, Wf = fast.shape
    w = conv_w.reshape(Cs, Cf).astype(jnp.float32)
    y = jnp.einsum('oc,ncdhw->nodhw', w, fast.astype(jnp.float32))
    y = y + conv_b.astype(jnp.float32)[None, :, None, None, None]
    AD = _interp_matrix_1d(Ds, Df)
    AH = _interp_matrix_1d(Hs, Hf)
    AW = _interp_matrix_1d(Ws, Wf)
    z = jnp.einsum('pd,ncdhw->ncphw', AD, y)
    z = jnp.einsum('qh,ncphw->ncpqw', AH, z)
    z = jnp.einsum('rw,ncpqw->ncpqr', AW, z)
    return jnp.concatenate([slow, z.astype(slow.dtype)], axis=1)


if __name__ == "__main__":
    # SlowFast-style shapes: slow = fewer frames / more channels,
    # fast = more frames / fewer channels, same spatial resolution.
    slow_channels, fast_channels = 8, 4
    N = 2
    Ds, Hs, Ws = 4, 8, 8
    Df, Hf, Wf = 16, 8, 8

    key = jax.random.PRNGKey(0)
    k_slow, k_fast, k_w, k_b = jax.random.split(key, 4)
    slow_features = jax.random.normal(k_slow, (N, slow_channels, Ds, Hs, Ws), jnp.float32)
    fast_features = jax.random.normal(k_fast, (N, fast_channels, Df, Hf, Wf), jnp.float32)
    conv_w = jax.random.normal(k_w, (slow_channels, fast_channels, 1, 1, 1), jnp.float32) * 0.1
    conv_b = jax.random.normal(k_b, (slow_channels,), jnp.float32) * 0.1

    out = jax.block_until_ready(
        lateral_connections(slow_features, fast_features, conv_w, conv_b))
    ref = _reference(slow_features, fast_features, conv_w, conv_b)
    assert out.shape == (N, 2 * slow_channels, Ds, Hs, Ws), out.shape
    assert jnp.allclose(out, ref, atol=1e-4, rtol=1e-4), \
        float(jnp.max(jnp.abs(out - ref)))

    # Secondary check: general path where spatial sizes differ as well.
    slow_g = jax.random.normal(k_slow, (1, slow_channels, Ds, Hs, Ws), jnp.float32)
    fast_g = jax.random.normal(k_fast, (1, fast_channels, 8, 16, 16), jnp.float32)
    out_g = jax.block_until_ready(
        lateral_connections(slow_g, fast_g, conv_w, conv_b))
    ref_g = _reference(slow_g, fast_g, conv_w, conv_b)
    assert jnp.allclose(out_g, ref_g, atol=1e-4, rtol=1e-4), \
        float(jnp.max(jnp.abs(out_g - ref_g)))

    print("KERNEL_OK")
</pallas_src>

<mosaic_0001>
module attributes {stable_mosaic.version = 11 : i64} {
  func.func @fused_kernel(%arg0: i32, %arg1: i32, %arg2: memref<1x32x64xf32, #tpu.memory_space<vmem>>, %arg3: memref<1x64x64xf32, #tpu.memory_space<vmem>>, %arg4: memref<32x64xf32, #tpu.memory_space<vmem>>, %arg5: memref<32x1xf32, #tpu.memory_space<vmem>>, %arg6: memref<1x64x64xf32, #tpu.memory_space<vmem>>) attributes {dimension_semantics = [#tpu.dimension_semantics<parallel>, #tpu.dimension_semantics<parallel>], iteration_bounds = array<i64: 2, 1>, scalar_prefetch = 0 : i64, scratch_operands = 0 : i64, tpu.core_type = #tpu.core_type<tc>, window_params = [{transform_indices = @transform_0, window_bounds = array<i64: 1, 32, 64>}, {transform_indices = @transform_1, window_bounds = array<i64: 1, 64, 64>}, {pipeline_mode = #tpu.pipeline_mode<synchronous>, transform_indices = @transform_2, window_bounds = array<i64: 32, 64>}, {pipeline_mode = #tpu.pipeline_mode<synchronous>, transform_indices = @transform_3, window_bounds = array<i64: 32, 1>}, {transform_indices = @transform_4, window_bounds = array<i64: 1, 64, 64>}]} {
    %c0 = arith.constant 0 : index
    %c0_0 = arith.constant 0 : index
    %c0_1 = arith.constant 0 : index
    %0 = vector.load %arg2[%c0, %c0_0, %c0_1] : memref<1x32x64xf32, #tpu.memory_space<vmem>>, vector<1x32x64xf32>
    %1 = vector.shape_cast %0 : vector<1x32x64xf32> to vector<32x64xf32>
    %c0_2 = arith.constant 0 : index
    %c0_3 = arith.constant 0 : index
    %c0_4 = arith.constant 0 : index
    %2 = vector.load %arg6[%c0_2, %c0_3, %c0_4] : memref<1x64x64xf32, #tpu.memory_space<vmem>>, vector<1x32x64xf32>
    %3 = vector.shape_cast %2 : vector<1x32x64xf32> to vector<32x64xf32>
    %4 = vector.shape_cast %1 : vector<32x64xf32> to vector<1x32x64xf32>
    tpu.vector_store %arg6[%c0_2, %c0_3, %c0_4], %4 {strides = array<i32>} : memref<1x64x64xf32, #tpu.memory_space<vmem>>, vector<1x32x64xf32>,
    %c0_5 = arith.constant 0 : index
    %c0_6 = arith.constant 0 : index
    %5 = vector.load %arg4[%c0_5, %c0_6] : memref<32x64xf32, #tpu.memory_space<vmem>>, vector<32x64xf32>
    %c0_7 = arith.constant 0 : index
    %c0_8 = arith.constant 0 : index
    %c0_9 = arith.constant 0 : index
    %6 = vector.load %arg3[%c0_7, %c0_8, %c0_9] : memref<1x64x64xf32, #tpu.memory_space<vmem>>, vector<1x64x64xf32>
    %7 = vector.shape_cast %6 : vector<1x64x64xf32> to vector<64x64xf32>
    %cst = arith.constant dense<0.000000e+00> : vector<32x64xf32>
    %8 = tpu.matmul %5, %7, %cst {dimension_numbers = #tpu.dot_dimension_numbers<[1], [0], [0], [1], [0, 0, 1, 1], [], []>} : vector<32x64xf32>, vector<64x64xf32>, vector<32x64xf32> -> vector<32x64xf32>
    %c0_10 = arith.constant 0 : index
    %c0_11 = arith.constant 0 : index
    %9 = vector.load %arg5[%c0_10, %c0_11] : memref<32x1xf32, #tpu.memory_space<vmem>>, vector<32x1xf32>
    %10 = vector.broadcast %9 : vector<32x1xf32> to vector<32x64xf32>
    %11 = arith.addf %8, %10 : vector<32x64xf32>
    %c0_12 = arith.constant 0 : index
    %c32 = arith.constant 32 : index
    %c0_13 = arith.constant 0 : index
    %12 = vector.load %arg6[%c0_12, %c32, %c0_13] : memref<1x64x64xf32, #tpu.memory_space<vmem>>, vector<1x32x64xf32>
    %13 = vector.shape_cast %12 : vector<1x32x64xf32> to vector<32x64xf32>
    %14 = vector.shape_cast %11 : vector<32x64xf32> to vector<1x32x64xf32>
    tpu.vector_store %arg6[%c0_12, %c32, %c0_13], %14 {strides = array<i32>} : memref<1x64x64xf32, #tpu.memory_space<vmem>>, vector<1x32x64xf32>,
    return
  }
  func.func @transform_0(%arg0: i32, %arg1: i32) -> (i32, i32, i32) {
    %c0_i32 = arith.constant 0 : i32
    %c0_i32_0 = arith.constant 0 : i32
    return %arg0, %c0_i32, %arg1 : i32, i32, i32
  }
  func.func @transform_1(%arg0: i32, %arg1: i32) -> (i32, i32, i32) {
    %c0_i32 = arith.constant 0 : i32
    %c0_i32_0 = arith.constant 0 : i32
    return %arg0, %c0_i32, %arg1 : i32, i32, i32
  }
  func.func @transform_2(%arg0: i32, %arg1: i32) -> (i32, i32) {
    %c0_i32 = arith.constant 0 : i32
    %c0_i32_0 = arith.constant 0 : i32
    %c0_i32_1 = arith.constant 0 : i32
    return %c0_i32, %c0_i32_0 : i32, i32
  }
  func.func @transform_3(%arg0: i32, %arg1: i32) -> (i32, i32) {
    %c0_i32 = arith.constant 0 : i32
    %c0_i32_0 = arith.constant 0 : i32
    %c0_i32_1 = arith.constant 0 : i32
    return %c0_i32, %c0_i32_0 : i32, i32
  }
  func.func @transform_4(%arg0: i32, %arg1: i32) -> (i32, i32, i32) {
    %c0_i32 = arith.constant 0 : i32
    %c0_i32_0 = arith.constant 0 : i32
    return %arg0, %c0_i32, %arg1 : i32, i32, i32
  }
}

</mosaic_0001>

<llo_original>
// kernel: tpu_custom_call.1
$region0: #{tpu_custom_call.1}
  #allocation0 [shape = 'u32[]', space=smem, size = 0x4, offset = 0x4, fixed_abs, tag = 'smem constant byte address 0x4 - core index']
  #allocation1 [shape = 'u32[144,128]{1,0:T(1,128)}', space=vmem, size = 0x12000, scoped, tag = 'internal scratch']
  %s0 = inlined_call_operand.hbm [shape: f32[2,32,64], index: 0, kind: input, shape index: {}]
  %s1 = inlined_call_operand.hbm [shape: f32[2,64,64], index: 1, kind: input, shape index: {}]
  %s2 = inlined_call_operand.vmem [shape: f32[32,64], index: 2, kind: input, shape index: {}]
  %s3 = inlined_call_operand.vmem [shape: f32[32,1], index: 3, kind: input, shape index: {}]
  %s4 = inlined_call_operand.hbm [shape: f32[2,64,64], index: 4, kind: output, shape index: {}]
  %s5 = sld [smem:[#allocation0]]
  $region57: #{tpu_custom_call.1} parent=0
    _
  %s7 = ssub.s32 1, %s5
  %s8 = scalar_select 0, %s7, %s5
  $region1: #{tpu_custom_call.1} parent=0
    #allocation2 [shape = 'u8[32768]{0}', space=vmem, size = 0x8000, scoped, tag = 'input window, operand 0']
    #allocation3 [shape = 's32[2]{0}', space=sflag, size = 0x8, scoped, tag = 'scoped memory for tpu_custom_call.1']
    #allocation4 [shape = 's32[2]{0}', space=sflag, size = 0x8, scoped, tag = 'scoped memory for tpu_custom_call.1']
    #allocation5 [shape = 'u8[65536]{0}', space=vmem, size = 0x10000, scoped, tag = 'input window, operand 1']
    #allocation6 [shape = 's32[2]{0}', space=sflag, size = 0x8, scoped, tag = 'scoped memory for tpu_custom_call.1']
    #allocation7 [shape = 'u8[65536]{0}', space=vmem, size = 0x10000, scoped, tag = 'output window, operand 0']
    %9 = vsyncpa [#allocation3], 0
    %s10 = scalar_lea.sflag [#allocation3], 1
    %11 = vsyncpa %s10, 0
    %12 = vsyncpa [#allocation6], 0
    %s13 = scalar_lea.sflag [#allocation6], 1
    %14 = vsyncpa %s13, 0
    %15 = vsyncpa [#allocation4], 0
    %s16 = scalar_lea.sflag [#allocation4], 1
    %17 = vsyncpa %s16, 0
    loop: start=0, step=1, limit=4
    $region2: #{tpu_custom_call.1} parent=1 // loop_pre_header
      _
    $region3: #{tpu_custom_call.1} parent=1 // loop_header
      %s19 = sphi 0, %s23
      %p20 = scmp.ge.s32.totalorder %s19, 4
      %s26 = sphi 0, %s38
      %s27 = sphi 0, %s34
      %s28 = sphi 0, %s26
      %s29 = sphi 0, %s27
      %s30 = sphi 0, %s28
      %s31 = sphi 0, %s29
      %s43 = sphi 0, %s45
      %s46 = sphi 0, %s43
      %s47 = sphi 0, %s46
      %s63 = sphi 0, %s47
      %s71 = sphi 0, %s73
      %s74 = sphi 0, %s71
      %s75 = sphi 0, %s74
      %s91 = sphi 0, %s75
      %s95 = sphi 0, %s95
      %s97 = sphi 0, %s95
      %s98 = sphi 0, %s97
      %s112 = sphi 0, %s98
      %s116 = sphi 0, %s116
      %s118 = sphi 0, %s116
      %s119 = sphi 0, %s118
      %s133 = sphi 0, %s119
      %s141 = sphi 0, %s143
      %s144 = sphi 0, %s141
      %s145 = sphi 0, %s144
      %s161 = sphi 0, %s145
    $region4: #{tpu_custom_call.1} parent=1 // loop_header_branch
      %22 = sbr.rel (%p20) target = $region8
    $region5: #{tpu_custom_call.1} parent=1 // loop_body
      %s24 = ssub.s32 %s19, 1
      %s25 = ssub.s32 %s19, 2
      %s32 = sadd.s32 1, %s27
      %p33 = scmp.ge.s32.totalorder %s32, 1
      %s34 = scalar_select %p33, 0, %s32
      %s35 = sadd.s32 1, %s26
      %s36 = scalar_select %p33, %s35, %s26
      %p37 = scmp.ge.s32.totalorder %s36, 2
      %s38 = scalar_select %p37, 0, %s36
      %s39 = ssub.s32 %s26, %s38
      %s40 = ssub.s32 %s27, %s34
      %s41 = sor.u32 %s39, %s40
      %p42 = scmp.eq.s32.totalorder %s41, 0
      %s44 = sadd.s32 %s43, 1
      %s45 = scalar_select %p42, %s43, %s44
      %p48 = pneg %p42
      %p49 = scmp.eq.s32.totalorder %s19, 1
      %p50 = por %p48, %p49
      %p51 = scmp.ne.s32.totalorder %s43, %s46
      %p52 = scmp.eq.s32.totalorder %s19, 0
      %p53 = por %p51, %p52
      %p54 = scmp.ne.s32.totalorder %s43, %s46
      %p55 = scmp.eq.s32.totalorder %s24, 1
      %p56 = por %p54, %p55
      %p57 = scmp.ne.s32.totalorder %s46, %s47
      %p58 = scmp.eq.s32.totalorder %s24, 0
      %p59 = por %p57, %p58
      %p60 = scmp.ne.s32.totalorder %s46, %s47
      %p61 = scmp.eq.s32.totalorder %s25, 1
      %p62 = por %p60, %p61
      %p64 = scmp.ne.s32.totalorder %s47, %s63
      %p65 = scmp.eq.s32.totalorder %s25, 0
      %p66 = por %p64, %p65
      %s67 = ssub.s32 %s26, %s38
      %s68 = ssub.s32 %s27, %s34
      %s69 = sor.u32 %s67, %s68
      %p70 = scmp.eq.s32.totalorder %s69, 0
      %s72 = sadd.s32 %s71, 1
      %s73 = scalar_select %p70, %s71, %s72
      %p76 = pneg %p70
      %p77 = scmp.eq.s32.totalorder %s19, 1
      %p78 = por %p76, %p77
      %p79 = scmp.ne.s32.totalorder %s71, %s74
      %p80 = scmp.eq.s32.totalorder %s19, 0
      %p81 = por %p79, %p80
      %p82 = scmp.ne.s32.totalorder %s71, %s74
      %p83 = scmp.eq.s32.totalorder %s24, 1
      %p84 = por %p82, %p83
      %p85 = scmp.ne.s32.totalorder %s74, %s75
      %p86 = scmp.eq.s32.totalorder %s24, 0
      %p87 = por %p85, %p86
      %p88 = scmp.ne.s32.totalorder %s74, %s75
      %p89 = scmp.eq.s32.totalorder %s25, 1
      %p90 = por %p88, %p89
      %p92 = scmp.ne.s32.totalorder %s75, %s91
      %p93 = scmp.eq.s32.totalorder %s25, 0
      %p94 = por %p92, %p93
      %s96 = sadd.s32 %s95, 1
      %p99 = scmp.eq.s32.totalorder %s19, 1
      %p100 = scmp.ne.s32.totalorder %s95, %s97
      %p101 = scmp.eq.s32.totalorder %s19, 0
      %p102 = por %p100, %p101
      %p103 = scmp.ne.s32.totalorder %s95, %s97
      %p104 = scmp.eq.s32.totalorder %s24, 1
      %p105 = por %p103, %p104
      %p106 = scmp.ne.s32.totalorder %s97, %s98
      %p107 = scmp.eq.s32.totalorder %s24, 0
      %p108 = por %p106, %p107
      %p109 = scmp.ne.s32.totalorder %s97, %s98
      %p110 = scmp.eq.s32.totalorder %s25, 1
      %p111 = por %p109, %p110
      %p113 = scmp.ne.s32.totalorder %s98, %s112
      %p114 = scmp.eq.s32.totalorder %s25, 0
      %p115 = por %p113, %p114
      %s117 = sadd.s32 %s116, 1
      %p120 = scmp.eq.s32.totalorder %s19, 1
      %p121 = scmp.ne.s32.totalorder %s116, %s118
      %p122 = scmp.eq.s32.totalorder %s19, 0
      %p123 = por %p121, %p122
      %p124 = scmp.ne.s32.totalorder %s116, %s118
      %p125 = scmp.eq.s32.totalorder %s24, 1
      %p126 = por %p124, %p125
      %p127 = scmp.ne.s32.totalorder %s118, %s119
      %p128 = scmp.eq.s32.totalorder %s24, 0
      %p129 = por %p127, %p128
      %p130 = scmp.ne.s32.totalorder %s118, %s119
      %p131 = scmp.eq.s32.totalorder %s25, 1
      %p132 = por %p130, %p131
      %p134 = scmp.ne.s32.totalorder %s119, %s133
      %p135 = scmp.eq.s32.totalorder %s25, 0
      %p136 = por %p134, %p135
      %s137 = ssub.s32 %s26, %s38
      %s138 = ssub.s32 %s27, %s34
      %s139 = sor.u32 %s137, %s138
      %p140 = scmp.eq.s32.totalorder %s139, 0
      %s142 = sadd.s32 %s141, 1
      %s143 = scalar_select %p140, %s141, %s142
      %p146 = pneg %p140
      %p147 = scmp.eq.s32.totalorder %s19, 1
      %p148 = por %p146, %p147
      %p149 = scmp.ne.s32.totalorder %s141, %s144
      %p150 = scmp.eq.s32.totalorder %s19, 0
      %p151 = por %p149, %p150
      %p152 = scmp.ne.s32.totalorder %s141, %s144
      %p153 = scmp.eq.s32.totalorder %s24, 1
      %p154 = por %p152, %p153
      %p155 = scmp.ne.s32.totalorder %s144, %s145
      %p156 = scmp.eq.s32.totalorder %s24, 0
      %p157 = por %p155, %p156
      %p158 = scmp.ne.s32.totalorder %s144, %s145
      %p159 = scmp.eq.s32.totalorder %s25, 1
      %p160 = por %p158, %p159
      %p162 = scmp.ne.s32.totalorder %s145, %s161
      %p163 = scmp.eq.s32.totalorder %s25, 0
      %p164 = por %p162, %p163
      %p165 = scmp.le.s32.totalorder 1, %s19
      %p166 = scmp.lt.s32.totalorder %s19, 3
      %p167 = pnand %p165, %p166
      %p168 = pneg %p167
      // Predicated region
      $region9: #{tpu_custom_call.1} parent=5 // pred_check
        _
      $region10: #{tpu_custom_call.1} parent=5 // pred_check_branch
        %170 = sbr.rel (%p167) target = $region12
      $region11: #{tpu_custom_call.1} parent=5 // pred_region
        %s171 = ssub.s32 %s19, 1
        // Predicated region
        $region13: #{tpu_custom_call.1} parent=11 // pred_check
          %p172 = pneg %p108
        $region14: #{tpu_custom_call.1} parent=11 // pred_check_branch
          %174 = sbr.rel (%p172) target = $region16
        $region15: #{tpu_custom_call.1} parent=11 // pred_region
          _
        $region16: #{tpu_custom_call.1} parent=11 // pred_fallthru
          _
        // Predicated region
        $region17: #{tpu_custom_call.1} parent=11 // pred_check
          %p175 = pneg %p129
        $region18: #{tpu_custom_call.1} parent=11 // pred_check_branch
          %177 = sbr.rel (%p175) target = $region20
        $region19: #{tpu_custom_call.1} parent=11 // pred_region
          _
        $region20: #{tpu_custom_call.1} parent=11 // pred_fallthru
          _
      $region12: #{tpu_custom_call.1} parent=5 // pred_fallthru
        _
      %p178 = scmp.lt.s32.totalorder %s19, 2
      // Predicated region
      $region21: #{tpu_custom_call.1} parent=5 // pred_check
        %p179 = pneg %p178
      $region22: #{tpu_custom_call.1} parent=5 // pred_check_branch
        %181 = sbr.rel (%p179) target = $region24
      $region23: #{tpu_custom_call.1} parent=5 // pred_region
        // Predicated region
        $region25: #{tpu_custom_call.1} parent=23 // pred_check
          %p182 = pneg %p53
        $region26: #{tpu_custom_call.1} parent=23 // pred_check_branch
          %184 = sbr.rel (%p182) target = $region28
        $region27: #{tpu_custom_call.1} parent=23 // pred_region
          %s185 = sand.u32 %s43, 1
          %s186 = scalar_lea.sflag [#allocation3], %s185
          %s187 = sand.u32 %s43, 1
          %s188 = smul.addr %s187, 32
          %s189 = scalar_lea.vmem [#allocation2], %s188
          %s191 = ssub.s32 512, 512
          %192 = vsyncadd %s186, %s191
          %s193 = smul.addr %s26, 4
          %s194 = sadd.s32 %s27, %s193
          %s195 = smul.addr %s194, 128
          %s196 = scalar_lea.hbm %s0, %s195
          %s197 = sshll.u32 %s189, 4
          %s198 = int_to_ptr.vmem [resolvable:$true] %s197
          %203 = dma.hbm_to_vmem [thread:$0]  %s196, 512, %s198, %s186, 128, 128, 8
        $region28: #{tpu_custom_call.1} parent=23 // pred_fallthru
          _
        // Predicated region
        $region29: #{tpu_custom_call.1} parent=23 // pred_check
          %p204 = pneg %p81
        $region30: #{tpu_custom_call.1} parent=23 // pred_check_branch
          %206 = sbr.rel (%p204) target = $region32
        $region31: #{tpu_custom_call.1} parent=23 // pred_region
          %s207 = sand.u32 %s71, 1
          %s208 = scalar_lea.sflag [#allocation6], %s207
          %s209 = sand.u32 %s71, 1
          %s210 = smul.addr %s209, 64
          %s211 = scalar_lea.vmem [#allocation5], %s210
          %s213 = ssub.s32 1024, 1024
          %214 = vsyncadd %s208, %s213
          %s215 = smul.addr %s26, 8
          %s216 = sadd.s32 %s27, %s215
          %s217 = smul.addr %s216, 128
          %s218 = scalar_lea.hbm %s1, %s217
          %s219 = sshll.u32 %s211, 4
          %s220 = int_to_ptr.vmem [resolvable:$true] %s219
          %225 = dma.hbm_to_vmem [thread:$0]  %s218, 1024, %s220, %s208, 128, 128, 8
        $region32: #{tpu_custom_call.1} parent=23 // pred_fallthru
          _
      $region24: #{tpu_custom_call.1} parent=5 // pred_fallthru
        _
      %p226 = scmp.le.s32.totalorder 1, %s19
      %p227 = scmp.lt.s32.totalorder %s19, 3
      %p228 = pnand %p226, %p227
      %p229 = pneg %p228
      // Predicated region
      $region33: #{tpu_custom_call.1} parent=5 // pred_check
        _
      $region34: #{tpu_custom_call.1} parent=5 // pred_check_branch
        %231 = sbr.rel (%p228) target = $region36
      $region35: #{tpu_custom_call.1} parent=5 // pred_region
        %s232 = ssub.s32 %s19, 1
        %s233 = sand.u32 %s46, 1
        %s234 = scalar_lea.sflag [#allocation3], %s233
        %s235 = sand.u32 %s46, 1
        %s236 = smul.addr %s235, 32
        %s237 = scalar_lea.vmem [#allocation2], %s236
        // Predicated region
        $region37: #{tpu_custom_call.1} parent=35 // pred_check
          %p238 = pneg %p59
        $region38: #{tpu_custom_call.1} parent=35 // pred_check_branch
          %240 = sbr.rel (%p238) target = $region40
        $region39: #{tpu_custom_call.1} parent=35 // pred_region
          %241 = dma.done %s234, 512
        $region40: #{tpu_custom_call.1} parent=35 // pred_fallthru
          _
        %s242 = sand.u32 %s74, 1
        %s243 = scalar_lea.sflag [#allocation6], %s242
        %s244 = sand.u32 %s74, 1
        %s245 = smul.addr %s244, 64
        %s246 = scalar_lea.vmem [#allocation5], %s245
        // Predicated region
        $region41: #{tpu_custom_call.1} parent=35 // pred_check
          %p247 = pneg %p87
        $region42: #{tpu_custom_call.1} parent=35 // pred_check_branch
          %249 = sbr.rel (%p247) target = $region44
        $region43: #{tpu_custom_call.1} parent=35 // pred_region
          %250 = dma.done %s243, 1024
        $region44: #{tpu_custom_call.1} parent=35 // pred_fallthru
          _
        %s251 = sand.u32 %s46, 1
        %s252 = scalar_lea.sflag [#allocation3], %s251
        %s253 = sand.u32 %s46, 1
        %s254 = smul.addr %s253, 32
        %s255 = scalar_lea.vmem [#allocation2], %s254
        %p256 = pneg %p59
        %p257 = pneg %p56
        %s258 = sand.u32 %s74, 1
        %s259 = scalar_lea.sflag [#allocation6], %s258
        %s260 = sand.u32 %s74, 1
        %s261 = smul.addr %s260, 64
        %s262 = scalar_lea.vmem [#allocation5], %s261
        %p263 = pneg %p87
        %p264 = pneg %p84
        %p265 = pneg %p108
        %p266 = pneg %p105
        %p267 = pneg %p129
        %p268 = pneg %p126
        %p269 = pneg %p157
        %p270 = pneg %p154
        %s271 = sand.u32 %s144, 1
        %s272 = scalar_lea.sflag [#allocation4], %s271
        %s273 = sand.u32 %s144, 1
        %s274 = smul.addr %s273, 64
        %s275 = scalar_lea.vmem [#allocation7], %s274
        %v276 = vld [vmem:[%s237] sm:$0xff]
        %v277 = vld [vmem:[%s237 + $0x8] sm:$0xff]
        %v278 = vld [vmem:[%s237 + $0x10] sm:$0xff]
        %v279 = vld [vmem:[%s237 + $0x18] sm:$0xff]
        %vm280 = vcmask 523264
        %281 = vst.msk [vmem:[%s275] sm:$0xff] %vm280, %v276
        %282 = vst.msk [vmem:[%s275 + $0x8] sm:$0xff] %vm280, %v277
        %283 = vst.msk [vmem:[%s275 + $0x10] sm:$0xff] %vm280, %v278
        %284 = vst.msk [vmem:[%s275 + $0x18] sm:$0xff] %vm280, %v279
        %v285 = vld [vmem:[%s2] sm:$0xff]
        %v286 = vld [vmem:[%s2 + $0x8] sm:$0xff]
        %v287 = vld [vmem:[%s2 + $0x10] sm:$0xff]
        %v288 = vld [vmem:[%s2 + $0x18] sm:$0xff]
        %v289 = vld [vmem:[%s246] sm:$0xff]
        %v290 = vld [vmem:[%s246 + $0x8] sm:$0xff]
        %v291 = vld [vmem:[%s246 + $0x10] sm:$0xff]
        %v292 = vld [vmem:[%s246 + $0x18] sm:$0xff]
        %v293 = vld [vmem:[%s246 + $0x20] sm:$0xff]
        %v294 = vld [vmem:[%s246 + $0x28] sm:$0xff]
        %v295 = vld [vmem:[%s246 + $0x30] sm:$0xff]
        %v296 = vld [vmem:[%s246 + $0x38] sm:$0xff]
        %v297 = vld [vmem:[%s3] sm:$0xff]
        %v298 = vld [vmem:[%s3 + $0x8] sm:$0xff]
        %v299 = vld [vmem:[%s3 + $0x10] sm:$0xff]
        %v300 = vld [vmem:[%s3 + $0x18] sm:$0xff]
        %302 = vset.pattern.permute.xlu0 0
        %303 = vperm.xlu0 %302, %v297
        %v304 = vpop.permute.xlu0 %303
        %307 = vset.pattern.permute.xlu0 0
        %308 = vperm.xlu0 %307, %v298
        %v309 = vpop.permute.xlu0 %308
        %312 = vset.pattern.permute.xlu0 0
        %313 = vperm.xlu0 %312, %v299
        %v314 = vpop.permute.xlu0 %313
        %317 = vset.pattern.permute.xlu0 0
        %318 = vperm.xlu0 %317, %v300
        %v319 = vpop.permute.xlu0 %318
        %v322 = vsel %vm280, %v285, 0
        %v325 = vsel %vm280, %v286, 0
        %v328 = vsel %vm280, %v287, 0
        %v331 = vsel %vm280, %v288, 0
        %333 = vmatprep.subr.mxu0 0.0
        %334 = vmatpush1.msra.mxu0 %v289
        %335 = vmatprep.subr.mxu0 0.0
        %336 = vmatpush1.msra.mxu0 %v290
        %337 = vmatprep.subr.mxu0 0.0
        %338 = vmatpush1.msra.mxu0 %v291
        %339 = vmatprep.subr.mxu0 0.0
        %340 = vmatpush1.msra.mxu0 %v292
        %341 = vmatprep.subr.mxu0 0.0
        %342 = vmatpush1.msra.mxu0 %v293
        %343 = vmatprep.subr.mxu0 0.0
        %344 = vmatpush1.msra.mxu0 %v294
        %345 = vmatprep.subr.mxu0 0.0
        %346 = vmatpush1.msra.mxu0 %v295
        %347 = vmatprep.subr.mxu0 0.0
        %348 = vmatpush1.msra.mxu0 %v296
        %349 = vmatprep.subr.mxu0 0.0
        %350 = vmatpush1.msra.mxu0 0.0
        %351 = vmatprep.subr.mxu0 0.0
        %352 = vmatpush1.msra.mxu0 0.0
        %353 = vmatprep.subr.mxu0 0.0
        %354 = vmatpush1.msra.mxu0 0.0
        %355 = vmatprep.subr.mxu0 0.0
        %356 = vmatpush1.msra.mxu0 0.0
        %357 = vmatprep.subr.mxu0 0.0
        %358 = vmatpush1.msra.mxu0 0.0
        %359 = vmatprep.subr.mxu0 0.0
        %360 = vmatpush1.msra.mxu0 0.0
        %361 = vmatprep.subr.mxu0 0.0
        %362 = vmatpush1.msra.mxu0 0.0
        %363 = vmatprep.subr.mxu0 0.0
        %364 = vmatpush1.msra.mxu0 0.0
        %365 = vmatprep.subr.mxu0 0.0
        %366 = vmatpush1.msra.mxu0 0.0
        %367 = vmatprep.subr.mxu0 0.0
        %368 = vmatpush1.msra.mxu0 0.0
        %369 = vmatprep.subr.mxu0 0.0
        %370 = vmatpush1.msra.mxu0 0.0
        %371 = vmatprep.subr.mxu0 0.0
        %372 = vmatpush1.msra.mxu0 0.0
        %373 = vmatprep.subr.mxu0 0.0
        %374 = vmatpush1.msra.mxu0 0.0
        %375 = vmatprep.subr.mxu0 0.0
        %376 = vmatpush1.msra.mxu0 0.0
        %377 = vmatprep.subr.mxu0 0.0
        %378 = vmatpush1.msra.mxu0 0.0
        %379 = vmatprep.subr.mxu0 0.0
        %380 = vmatpush1.msra.mxu0 0.0
        %381 = vmatprep.subr.mxu0 0.0
        %382 = vmatpush1.msra.mxu0 0.0
        %383 = vmatprep.subr.mxu0 0.0
        %384 = vmatpush1.msra.mxu0 0.0
        %385 = vmatprep.subr.mxu0 0.0
        %386 = vmatpush1.msra.mxu0 0.0
        %387 = vmatprep.subr.mxu0 0.0
        %388 = vmatpush1.msra.mxu0 0.0
        %389 = vmatprep.subr.mxu0 0.0
        %390 = vmatpush1.msra.mxu0 0.0
        %391 = vmatprep.subr.mxu0 0.0
        %392 = vmatpush1.msra.mxu0 0.0
        %393 = vmatprep.subr.mxu0 0.0
        %394 = vmatpush1.msra.mxu0 0.0
        %395 = vmatprep.subr.mxu0 0.0
        %396 = vmatpush1.msra.mxu0 0.0
        %397 = vmatprep.mubr.f32.mxu0 0.0
        %398 = vmatmul.mubr.f32.gmra.mrb[0].mxu0 %v322
        %v399 = vpop.f32.mrb[0].mxu0
        %v400 = vadd.f32 %v304, %v399
        %v401 = vpop.f32.mrb[0].mxu0
        %402 = vmatprep.mubr.f32.mxu0 0.0
        %403 = vmatmul.mubr.f32.gmra.mrb[0].mxu0 %v325
        %v404 = vpop.f32.mrb[0].mxu0
        %v405 = vadd.f32 %v309, %v404
        %v406 = vpop.f32.mrb[0].mxu0
        %407 = vmatprep.mubr.f32.mxu0 0.0
        %408 = vmatmul.mubr.f32.gmra.mrb[0].mxu0 %v328
        %v409 = vpop.f32.mrb[0].mxu0
        %v410 = vadd.f32 %v314, %v409
        %v411 = vpop.f32.mrb[0].mxu0
        %412 = vmatprep.mubr.f32.mxu0 0.0
        %413 = vmatmul.mubr.f32.gmra.mrb[0].mxu0 %v331
        %v414 = vpop.f32.mrb[0].mxu0
        %v415 = vadd.f32 %v319, %v414
        %v416 = vpop.f32.mrb[0].mxu0
        %417 = vdwg.mxu0
        %418 = vst.msk [vmem:[%s275 + $0x20] sm:$0xff] %vm280, %v400
        %419 = vst.msk [vmem:[%s275 + $0x28] sm:$0xff] %vm280, %v405
        %420 = vst.msk [vmem:[%s275 + $0x30] sm:$0xff] %vm280, %v410
        %421 = vst.msk [vmem:[%s275 + $0x38] sm:$0xff] %vm280, %v415
        %s422 = sand.u32 %s144, 1
        %s423 = scalar_lea.sflag [#allocation4], %s422
        %s424 = sand.u32 %s144, 1
        %s425 = smul.addr %s424, 64
        %s426 = scalar_lea.vmem [#allocation7], %s425
        // Predicated region
        $region45: #{tpu_custom_call.1} parent=35 // pred_check
          %p427 = pneg %p154
        $region46: #{tpu_custom_call.1} parent=35 // pred_check_branch
          %429 = sbr.rel (%p427) target = $region48
        $region47: #{tpu_custom_call.1} parent=35 // pred_region
          %s431 = ssub.s32 1024, 1024
          %432 = vsyncadd %s423, %s431
          %s433 = smul.addr %s28, 8
          %s434 = sadd.s32 %s29, %s433
          %s435 = smul.addr %s434, 128
          %s436 = scalar_lea.hbm %s4, %s435
          %s437 = sshll.u32 %s426, 4
          %s438 = int_to_ptr.vmem [resolvable:$true] %s437
          %443 = dma.vmem_to_hbm [thread:$0]  %s438, 1024, %s436, %s423, 128, 128, 8
        $region48: #{tpu_custom_call.1} parent=35 // pred_fallthru
          _
      $region36: #{tpu_custom_call.1} parent=5 // pred_fallthru
        _
      %p444 = scmp.le.s32.totalorder 2, %s19
      // Predicated region
      $region49: #{tpu_custom_call.1} parent=5 // pred_check
        %p445 = pneg %p444
      $region50: #{tpu_custom_call.1} parent=5 // pred_check_branch
        %447 = sbr.rel (%p445) target = $region52
      $region51: #{tpu_custom_call.1} parent=5 // pred_region
        %s448 = ssub.s32 %s19, 2
        // Predicated region
        $region53: #{tpu_custom_call.1} parent=51 // pred_check
          %p449 = pneg %p160
        $region54: #{tpu_custom_call.1} parent=51 // pred_check_branch
          %451 = sbr.rel (%p449) target = $region56
        $region55: #{tpu_custom_call.1} parent=51 // pred_region
          %s452 = sand.u32 %s145, 1
          %s453 = scalar_lea.sflag [#allocation4], %s452
          %s454 = sand.u32 %s145, 1
          %s455 = smul.addr %s454, 64
          %s456 = scalar_lea.vmem [#allocation7], %s455
          %457 = dma.done %s453, 1024
        $region56: #{tpu_custom_call.1} parent=51 // pred_fallthru
          _
      $region52: #{tpu_custom_call.1} parent=5 // pred_fallthru
        _
    $region6: #{tpu_custom_call.1} parent=1 // loop_footer
      %s23 = sadd.s32 1, %s19
    $region7: #{tpu_custom_call.1} parent=1 // loop_footer_branch
      %18 = sbr.rel target = $region3
    $region8: #{tpu_custom_call.1} parent=1 // loop_exit
      _
    %458 = vsyncpa [#allocation3], 1
    %s459 = scalar_lea.sflag [#allocation3], 1
    %460 = vsyncpa %s459, 1
    %461 = vsyncpa [#allocation6], 1
    %s462 = scalar_lea.sflag [#allocation6], 1
    %463 = vsyncpa %s462, 1
    %464 = vsyncpa [#allocation4], 1
    %s465 = scalar_lea.sflag [#allocation4], 1
    %466 = vsyncpa %s465, 1

</llo_original>
